<compile_context>
chip_gen: v7x
topology: tpu7x:2x2x1
jax: 0.10.0
libtpu: 0.0.40
codegen_flags: <defaults>
</compile_context>

<pallas_src>
import math

import jax
import jax.numpy as jnp
from jax import lax
from jax.experimental import pallas as pl
from jax.experimental.pallas import tpu as pltpu


MASKS = {
    "stark1": jnp.array([[0., 1., 0.], [0., 1., 0.], [0., 1., 0.]], jnp.float32),
    "stark2": jnp.array([[0., 0., 0.], [1., 1., 1.], [0., 0., 0.]], jnp.float32),
    "stark3": jnp.array([[1., 0., 0.], [0., 1., 0.], [0., 0., 1.]], jnp.float32),
    "stark4": jnp.array([[0., 0., 1.], [0., 1., 0.], [1., 0., 0.]], jnp.float32),
}

# Static non-zero (kh, kw) positions of each mask (mask value there is 1.0),
# so the masked conv is exactly the sum over these 3 taps.
TAPS = {
    "stark1": ((0, 1), (1, 1), (2, 1)),
    "stark2": ((1, 0), (1, 1), (1, 2)),
    "stark3": ((0, 0), (1, 1), (2, 2)),
    "stark4": ((0, 2), (1, 1), (2, 0)),
}


def _stark_gemm_kernel(x_ref, w_ref, b_ref, o_ref):
    # x_ref: (Kg, TP)   bf16 live-tap im2col tile (lane dim = pixel tile, 128k)
    # w_ref: (Cg, Kg)   bf16 stacked live-tap weights for this group
    # b_ref: (Cg, 1)    f32 bias for this group
    # o_ref: (Cg, TP)   f32 NCHW-layout output tile (lane-dense, unmasked vst)
    acc = jnp.dot(w_ref[...], x_ref[...], preferred_element_type=jnp.float32)
    o_ref[...] = (acc + b_ref[...]).astype(o_ref.dtype)


def _vmem_capacity_bytes():
    """Per-core VMEM capacity, with a conservative (v7x) fallback."""
    try:
        cap = int(pltpu.get_tpu_info().vmem_capacity_bytes)
        if cap > 0:
            return cap
    except Exception:
        pass
    return 64 * (1 << 20)


def _block_bytes(tp, kg, cg, n_buf):
    lhs = 2 * kg * tp * n_buf            # bf16 LHS tile, n_buf-deep pipeline
    out = 4 * cg * tp * 2                # f32 output tile, double-buffered
    wts = 2 * cg * kg * 2 + 4 * cg * 2   # weights + bias (resident, tiny)
    acc = 4 * cg * tp                    # matmul result temporary
    return lhs + out + wts + acc


def _choose_tile(P, Kg, cout_g, vmem_budget, big_vmem, n_buf):
    """Pick a lane-dense pixel tile (multiple of 128) and the padded P."""
    cands = (2048, 1024, 512, 256) if big_vmem else (1024, 512, 256)
    for tp in cands:
        if _block_bytes(tp, Kg, cout_g, n_buf) > vmem_budget // 3:
            continue
        p_pad = pl.cdiv(P, tp) * tp
        if (p_pad - P) * 8 <= P:         # <= 12.5% lane-padding waste
            return tp, p_pad
    tp = 128
    return tp, pl.cdiv(P, tp) * tp


def _make_lhs_spec(block_shape, index_map, n_buffers):
    if n_buffers > 2:
        try:
            return pl.BlockSpec(block_shape, index_map,
                                pipeline_mode=pl.Buffered(n_buffers))
        except Exception:
            pass
    return pl.BlockSpec(block_shape, index_map)


def stark_conv2d(x_nchw, weight, bias, *, stride=1, padding=1, dilation=1,
                 groups=1, _type_="stark1"):
    """Forward pass of StarkIndustriesProduction (masked 3x3 conv)."""
    assert dilation in (1, 2), "dilation must be 1 or 2"
    taps = TAPS[_type_]
    T = len(taps)  # == 3

    N, Cin, H, W = x_nchw.shape
    Cout = weight.shape[0]
    cin_g = Cin // groups
    cout_g = Cout // groups
    assert groups == 1 or cout_g % 8 == 0, (
        "for groups > 1 the per-group out-channel count must be a multiple of 8")

    Ho = (H + 2 * padding - dilation * 2 - 1) // stride + 1
    Wo = (W + 2 * padding - dilation * 2 - 1) // stride + 1
    P = Ho * Wo
    Kg = T * cin_g

    vmem_cap = _vmem_capacity_bytes()
    big_vmem = vmem_cap >= 100 * (1 << 20)       # v5e / v6e (128 MiB) vs v7x (64 MiB)
    vmem_limit = int(max(32 * (1 << 20), (vmem_cap * 3) // 4))
    n_buf = 3 if big_vmem else 2                 # extra pipeline depth on big-VMEM chips

    TP, P_pad = _choose_tile(P, Kg, cout_g, vmem_limit, big_vmem, n_buf)
    n_ptiles = P_pad // TP

    # ---- trace-time glue: pad + live-tap gather, kept entirely in NCHW minor
    #      layout (no NHWC relayout), bf16 data path ---------------------------
    x = x_nchw.astype(jnp.bfloat16)
    x = jnp.pad(x, ((0, 0), (0, 0), (padding, padding), (padding, padding)))
    cols = []
    for kh, kw in taps:
        cols.append(lax.slice(
            x,
            (0, 0, kh * dilation, kw * dilation),
            (N, Cin,
             kh * dilation + (Ho - 1) * stride + 1,
             kw * dilation + (Wo - 1) * stride + 1),
            (1, 1, stride, stride)))                     # (N, Cin, Ho, Wo)
    xt = jnp.stack(cols, axis=0)                         # (T, N, Cin, Ho, Wo)
    xt = xt.reshape(T, N, groups, cin_g, P)              # minor dims untouched
    xt = jnp.transpose(xt, (2, 1, 0, 3, 4))              # (g, N, T, cin_g, P)
    lhs = xt.reshape(groups, N, Kg, P)                   # K index = tap*cin_g + ci
    if P_pad != P:
        lhs = jnp.pad(lhs, ((0, 0), (0, 0), (0, 0), (0, P_pad - P)))

    # weights: take only the 3 live taps (mask value 1), stacked along K
    w = weight.astype(jnp.bfloat16)                      # (Cout, cin_g, 3, 3)
    w_taps = jnp.stack([w[:, :, kh, kw] for kh, kw in taps], axis=1)  # (Cout, T, cin_g)
    rhs = w_taps.reshape(groups, cout_g, Kg)             # K index = tap*cin_g + ci

    b = bias if bias is not None else jnp.zeros((Cout,), jnp.float32)
    b = b.astype(jnp.float32).reshape(groups, cout_g, 1)

    # Grid: largest independent axis first so megacore sharding (v7x 2 TCs)
    # always has work; groups in the middle keeps weights/bias resident over
    # the innermost axis.
    if n_ptiles >= N:
        grid = (n_ptiles, groups, N)
        lhs_map = lambda p, g, n: (g, n, 0, p)
        wb_map = lambda p, g, n: (g, 0, 0)
        out_map = lambda p, g, n: (n, g, p)
    else:
        grid = (N, groups, n_ptiles)
        lhs_map = lambda n, g, p: (g, n, 0, p)
        wb_map = lambda n, g, p: (g, 0, 0)
        out_map = lambda n, g, p: (n, g, p)

    cost = pl.CostEstimate(
        flops=2 * groups * N * P_pad * Kg * cout_g,
        transcendentals=0,
        bytes_accessed=(2 * lhs.size + 2 * rhs.size + 4 * b.size
                        + 4 * N * Cout * P_pad))

    def _call(extra_buffers):
        lhs_spec = _make_lhs_spec((None, None, Kg, TP), lhs_map,
                                  n_buf if extra_buffers else 2)
        return pl.pallas_call(
            _stark_gemm_kernel,
            out_shape=jax.ShapeDtypeStruct((N, Cout, P_pad), jnp.float32),
            grid_spec=pltpu.PrefetchScalarGridSpec(
                num_scalar_prefetch=0,
                grid=grid,
                in_specs=[
                    # live-tap im2col LHS: (groups, N, Kg, P_pad)
                    lhs_spec,
                    # stacked weights: (groups, cout_g, Kg) -- resident
                    pl.BlockSpec((None, cout_g, Kg), wb_map),
                    # bias: (groups, cout_g, 1)
                    pl.BlockSpec((None, cout_g, 1), wb_map),
                ],
                # NCHW-layout output: (N, Cout, P_pad); lane dim TP (128-mult.)
                out_specs=pl.BlockSpec((None, cout_g, TP), out_map),
            ),
            compiler_params=pltpu.CompilerParams(
                dimension_semantics=("parallel", "parallel", "parallel"),
                vmem_limit_bytes=vmem_limit),
            cost_estimate=cost,
        )(lhs, rhs, b)

    if n_buf > 2:
        try:
            out_flat = _call(True)
        except Exception:
            out_flat = _call(False)   # fall back to default double-buffering
    else:
        out_flat = _call(False)

    if P_pad != P:
        out_flat = out_flat[:, :, :P]
    # Free reshape (splits the minor dim): already NCHW, no transpose pass.
    return out_flat.reshape(N, Cout, Ho, Wo)


def init_params(key, in_channels, out_channels, groups=1, use_bias=True):
    """Deterministic re-implementation of the PyTorch reset_parameters()."""
    kw_key, kb_key = jax.random.split(key)
    fan_in = (in_channels // groups) * 3 * 3
    bound_w = 1.0 / math.sqrt(fan_in)   # kaiming_uniform_(a=sqrt(5))
    weight = jax.random.uniform(
        kw_key, (out_channels, in_channels // groups, 3, 3),
        minval=-bound_w, maxval=bound_w, dtype=jnp.float32)
    bias = None
    if use_bias:
        bound_b = 1.0 / math.sqrt(fan_in)
        bias = jax.random.uniform(
            kb_key, (out_channels,), minval=-bound_b, maxval=bound_b,
            dtype=jnp.float32)
    return weight, bias


def _reference_conv(x_nchw, weight, bias, stride, padding, dilation, groups, _type_):
    w = weight * MASKS[_type_][None, None, :, :]
    out = lax.conv_general_dilated(
        x_nchw, w,
        window_strides=(stride, stride),
        padding=((padding, padding), (padding, padding)),
        rhs_dilation=(dilation, dilation),
        dimension_numbers=("NCHW", "OIHW", "NCHW"),
        feature_group_count=groups)
    if bias is not None:
        out = out + bias[None, :, None, None]
    return out


if __name__ == "__main__":
    key = jax.random.PRNGKey(0)
    k_x, k_p1, k_p2 = jax.random.split(key, 3)

    N, H, W = 2, 16, 16

    # (type, Cin, Cout, stride, padding, dilation, groups)
    configs = [
        ("stark1", 4, 8, 1, 1, 1, 1),    # base case
        ("stark3", 4, 8, 1, 2, 2, 1),    # dilation=2 path
        ("stark2", 4, 8, 2, 1, 1, 1),    # stride=2 path (P padded to 128)
        ("stark4", 4, 16, 1, 1, 1, 2),   # grouped conv path
    ]

    for _type_, Cin, Cout, stride, padding, dilation, groups in configs:
        x = jax.random.normal(k_x, (N, Cin, H, W), dtype=jnp.float32)
        weight, bias = init_params(k_p1 if Cout == 8 else k_p2,
                                   Cin, Cout, groups=groups, use_bias=True)

        out = stark_conv2d(x, weight, bias, stride=stride, padding=padding,
                           dilation=dilation, groups=groups, _type_=_type_)
        out = jax.block_until_ready(out)

        ref = _reference_conv(x, weight, bias, stride, padding, dilation,
                              groups, _type_)
        assert out.shape == ref.shape, (_type_, out.shape, ref.shape)
        # bf16 data path with f32 accumulation over K <= 12 taps*channels:
        # tolerance relaxed accordingly.
        assert jnp.allclose(out, ref, atol=5e-2, rtol=5e-2), (
            f"mismatch vs reference for {_type_}")

    print("KERNEL_OK")
</pallas_src>

<mosaic_0001>
module attributes {stable_mosaic.version = 11 : i64} {
  func.func @_stark_gemm_kernel(%arg0: i32, %arg1: i32, %arg2: i32, %arg3: memref<1x1x12x256xbf16, #tpu.memory_space<vmem>>, %arg4: memref<1x8x12xbf16, #tpu.memory_space<vmem>>, %arg5: memref<1x8x1xf32, #tpu.memory_space<vmem>>, %arg6: memref<1x8x256xf32, #tpu.memory_space<vmem>>) attributes {dimension_semantics = [#tpu.dimension_semantics<parallel>, #tpu.dimension_semantics<parallel>, #tpu.dimension_semantics<parallel>], iteration_bounds = array<i64: 2, 1, 1>, scalar_prefetch = 0 : i64, scratch_operands = 0 : i64, tpu.core_type = #tpu.core_type<tc>, window_params = [{transform_indices = @transform_0, window_bounds = array<i64: 1, 1, 12, 256>}, {transform_indices = @transform_1, window_bounds = array<i64: 1, 8, 12>}, {transform_indices = @transform_2, window_bounds = array<i64: 1, 8, 1>}, {transform_indices = @transform_3, window_bounds = array<i64: 1, 8, 256>}]} {
    %c0 = arith.constant 0 : index
    %c0_0 = arith.constant 0 : index
    %c0_1 = arith.constant 0 : index
    %0 = vector.load %arg4[%c0, %c0_0, %c0_1] : memref<1x8x12xbf16, #tpu.memory_space<vmem>>, vector<1x8x12xbf16>
    %1 = vector.shape_cast %0 : vector<1x8x12xbf16> to vector<8x12xbf16>
    %c0_2 = arith.constant 0 : index
    %c0_3 = arith.constant 0 : index
    %c0_4 = arith.constant 0 : index
    %c0_5 = arith.constant 0 : index
    %2 = vector.load %arg3[%c0_2, %c0_3, %c0_4, %c0_5] : memref<1x1x12x256xbf16, #tpu.memory_space<vmem>>, vector<1x1x12x256xbf16>
    %3 = vector.shape_cast %2 : vector<1x1x12x256xbf16> to vector<12x256xbf16>
    %cst = arith.constant dense<0.000000e+00> : vector<8x256xf32>
    %4 = tpu.matmul %1, %3, %cst {dimension_numbers = #tpu.dot_dimension_numbers<[1], [0], [0], [1], [0, 0, 1, 1], [], []>} : vector<8x12xbf16>, vector<12x256xbf16>, vector<8x256xf32> -> vector<8x256xf32>
    %c0_6 = arith.constant 0 : index
    %c0_7 = arith.constant 0 : index
    %c0_8 = arith.constant 0 : index
    %5 = vector.load %arg5[%c0_6, %c0_7, %c0_8] : memref<1x8x1xf32, #tpu.memory_space<vmem>>, vector<1x8x1xf32>
    %6 = vector.shape_cast %5 : vector<1x8x1xf32> to vector<8x1xf32>
    %7 = vector.broadcast %6 : vector<8x1xf32> to vector<8x256xf32>
    %8 = arith.addf %4, %7 : vector<8x256xf32>
    %c0_9 = arith.constant 0 : index
    %c0_10 = arith.constant 0 : index
    %c0_11 = arith.constant 0 : index
    %9 = vector.load %arg6[%c0_9, %c0_10, %c0_11] : memref<1x8x256xf32, #tpu.memory_space<vmem>>, vector<1x8x256xf32>
    %10 = vector.shape_cast %9 : vector<1x8x256xf32> to vector<8x256xf32>
    %11 = vector.shape_cast %8 : vector<8x256xf32> to vector<1x8x256xf32>
    tpu.vector_store %arg6[%c0_9, %c0_10, %c0_11], %11 {strides = array<i32>} : memref<1x8x256xf32, #tpu.memory_space<vmem>>, vector<1x8x256xf32>,
    return
  }
  func.func @transform_0(%arg0: i32, %arg1: i32, %arg2: i32) -> (i32, i32, i32, i32) {
    %c0_i32 = arith.constant 0 : i32
    %c0_i32_0 = arith.constant 0 : i32
    return %arg1, %arg0, %c0_i32, %arg2 : i32, i32, i32, i32
  }
  func.func @transform_1(%arg0: i32, %arg1: i32, %arg2: i32) -> (i32, i32, i32) {
    %c0_i32 = arith.constant 0 : i32
    %c0_i32_0 = arith.constant 0 : i32
    %c0_i32_1 = arith.constant 0 : i32
    return %arg1, %c0_i32, %c0_i32_0 : i32, i32, i32
  }
  func.func @transform_2(%arg0: i32, %arg1: i32, %arg2: i32) -> (i32, i32, i32) {
    %c0_i32 = arith.constant 0 : i32
    %c0_i32_0 = arith.constant 0 : i32
    %c0_i32_1 = arith.constant 0 : i32
    return %arg1, %c0_i32, %c0_i32_0 : i32, i32, i32
  }
  func.func @transform_3(%arg0: i32, %arg1: i32, %arg2: i32) -> (i32, i32, i32) {
    %c0_i32 = arith.constant 0 : i32
    return %arg0, %arg1, %arg2 : i32, i32, i32
  }
}

</mosaic_0001>

<llo_original>
// kernel: tpu_custom_call.1
$region0: #{tpu_custom_call.1}
  #allocation0 [shape = 'u32[]', space=smem, size = 0x4, offset = 0x4, fixed_abs, tag = 'smem constant byte address 0x4 - core index']
  #allocation1 [shape = 'u32[144,128]{1,0:T(1,128)}', space=vmem, size = 0x12000, scoped, tag = 'internal scratch']
  %s0 = inlined_call_operand.vmem [shape: bf16[1,2,12,256], index: 0, kind: input, shape index: {}]
  %s1 = inlined_call_operand.vmem [shape: bf16[1,8,12], index: 1, kind: input, shape index: {}]
  %s2 = inlined_call_operand.vmem [shape: f32[1,8,1], index: 2, kind: input, shape index: {}]
  %s3 = inlined_call_operand.hbm [shape: f32[2,8,256], index: 3, kind: output, shape index: {}]
  %s4 = sld [smem:[#allocation0]]
  $region45: #{tpu_custom_call.1} parent=0
    _
  %s6 = ssub.s32 1, %s4
  %s7 = scalar_select 0, %s6, %s4
  $region1: #{tpu_custom_call.1} parent=0
    #allocation2 [shape = 'u8[16384]{0}', space=vmem, size = 0x4000, scoped, tag = 'output window, operand 0']
    #allocation3 [shape = 's32[2]{0}', space=sflag, size = 0x8, scoped, tag = 'scoped memory for tpu_custom_call.1']
    %8 = vsyncpa [#allocation3], 0
    %s9 = scalar_lea.sflag [#allocation3], 1
    %10 = vsyncpa %s9, 0
    loop: start=0, step=1, limit=4
    $region2: #{tpu_custom_call.1} parent=1 // loop_pre_header
      _
    $region3: #{tpu_custom_call.1} parent=1 // loop_header
      %s12 = sphi 0, %s16
      %p13 = scmp.ge.s32.totalorder %s12, 4
      %s19 = sphi 0, %s38
      %s20 = sphi 0, %s34
      %s21 = sphi 0, %s30
      %s22 = sphi 0, %s19
      %s23 = sphi 0, %s20
      %s24 = sphi 0, %s21
      %s25 = sphi 0, %s22
      %s26 = sphi 0, %s23
      %s27 = sphi 0, %s24
      %s45 = sphi 0, %s47
      %s48 = sphi 0, %s45
      %s49 = sphi 0, %s48
      %s65 = sphi 0, %s49
      %s71 = sphi 0, %s73
      %s74 = sphi 0, %s71
      %s75 = sphi 0, %s74
      %s91 = sphi 0, %s75
      %s97 = sphi 0, %s99
      %s100 = sphi 0, %s97
      %s101 = sphi 0, %s100
      %s117 = sphi 0, %s101
      %s127 = sphi 0, %s129
      %s130 = sphi 0, %s127
      %s131 = sphi 0, %s130
      %s147 = sphi 0, %s131
    $region4: #{tpu_custom_call.1} parent=1 // loop_header_branch
      %15 = sbr.rel (%p13) target = $region8
    $region5: #{tpu_custom_call.1} parent=1 // loop_body
      %s17 = ssub.s32 %s12, 1
      %s18 = ssub.s32 %s12, 2
      %s28 = sadd.s32 1, %s21
      %p29 = scmp.ge.s32.totalorder %s28, 1
      %s30 = scalar_select %p29, 0, %s28
      %s31 = sadd.s32 1, %s20
      %s32 = scalar_select %p29, %s31, %s20
      %p33 = scmp.ge.s32.totalorder %s32, 1
      %s34 = scalar_select %p33, 0, %s32
      %s35 = sadd.s32 1, %s19
      %s36 = scalar_select %p33, %s35, %s19
      %p37 = scmp.ge.s32.totalorder %s36, 2
      %s38 = scalar_select %p37, 0, %s36
      %s39 = ssub.s32 %s20, %s34
      %s40 = ssub.s32 %s19, %s38
      %s41 = sor.u32 %s39, %s40
      %s42 = ssub.s32 %s21, %s30
      %s43 = sor.u32 %s41, %s42
      %p44 = scmp.eq.s32.totalorder %s43, 0
      %s46 = sadd.s32 %s45, 1
      %s47 = scalar_select %p44, %s45, %s46
      %p50 = pneg %p44
      %p51 = scmp.eq.s32.totalorder %s12, 1
      %p52 = por %p50, %p51
      %p53 = scmp.ne.s32.totalorder %s45, %s48
      %p54 = scmp.eq.s32.totalorder %s12, 0
      %p55 = por %p53, %p54
      %p56 = scmp.ne.s32.totalorder %s45, %s48
      %p57 = scmp.eq.s32.totalorder %s17, 1
      %p58 = por %p56, %p57
      %p59 = scmp.ne.s32.totalorder %s48, %s49
      %p60 = scmp.eq.s32.totalorder %s17, 0
      %p61 = por %p59, %p60
      %p62 = scmp.ne.s32.totalorder %s48, %s49
      %p63 = scmp.eq.s32.totalorder %s18, 1
      %p64 = por %p62, %p63
      %p66 = scmp.ne.s32.totalorder %s49, %s65
      %p67 = scmp.eq.s32.totalorder %s18, 0
      %p68 = por %p66, %p67
      %s69 = ssub.s32 %s20, %s34
      %p70 = scmp.eq.s32.totalorder %s69, 0
      %s72 = sadd.s32 %s71, 1
      %s73 = scalar_select %p70, %s71, %s72
      %p76 = pneg %p70
      %p77 = scmp.eq.s32.totalorder %s12, 1
      %p78 = por %p76, %p77
      %p79 = scmp.ne.s32.totalorder %s71, %s74
      %p80 = scmp.eq.s32.totalorder %s12, 0
      %p81 = por %p79, %p80
      %p82 = scmp.ne.s32.totalorder %s71, %s74
      %p83 = scmp.eq.s32.totalorder %s17, 1
      %p84 = por %p82, %p83
      %p85 = scmp.ne.s32.totalorder %s74, %s75
      %p86 = scmp.eq.s32.totalorder %s17, 0
      %p87 = por %p85, %p86
      %p88 = scmp.ne.s32.totalorder %s74, %s75
      %p89 = scmp.eq.s32.totalorder %s18, 1
      %p90 = por %p88, %p89
      %p92 = scmp.ne.s32.totalorder %s75, %s91
      %p93 = scmp.eq.s32.totalorder %s18, 0
      %p94 = por %p92, %p93
      %s95 = ssub.s32 %s20, %s34
      %p96 = scmp.eq.s32.totalorder %s95, 0
      %s98 = sadd.s32 %s97, 1
      %s99 = scalar_select %p96, %s97, %s98
      %p102 = pneg %p96
      %p103 = scmp.eq.s32.totalorder %s12, 1
      %p104 = por %p102, %p103
      %p105 = scmp.ne.s32.totalorder %s97, %s100
      %p106 = scmp.eq.s32.totalorder %s12, 0
      %p107 = por %p105, %p106
      %p108 = scmp.ne.s32.totalorder %s97, %s100
      %p109 = scmp.eq.s32.totalorder %s17, 1
      %p110 = por %p108, %p109
      %p111 = scmp.ne.s32.totalorder %s100, %s101
      %p112 = scmp.eq.s32.totalorder %s17, 0
      %p113 = por %p111, %p112
      %p114 = scmp.ne.s32.totalorder %s100, %s101
      %p115 = scmp.eq.s32.totalorder %s18, 1
      %p116 = por %p114, %p115
      %p118 = scmp.ne.s32.totalorder %s101, %s117
      %p119 = scmp.eq.s32.totalorder %s18, 0
      %p120 = por %p118, %p119
      %s121 = ssub.s32 %s19, %s38
      %s122 = ssub.s32 %s20, %s34
      %s123 = sor.u32 %s121, %s122
      %s124 = ssub.s32 %s21, %s30
      %s125 = sor.u32 %s123, %s124
      %p126 = scmp.eq.s32.totalorder %s125, 0
      %s128 = sadd.s32 %s127, 1
      %s129 = scalar_select %p126, %s127, %s128
      %p132 = pneg %p126
      %p133 = scmp.eq.s32.totalorder %s12, 1
      %p134 = por %p132, %p133
      %p135 = scmp.ne.s32.totalorder %s127, %s130
      %p136 = scmp.eq.s32.totalorder %s12, 0
      %p137 = por %p135, %p136
      %p138 = scmp.ne.s32.totalorder %s127, %s130
      %p139 = scmp.eq.s32.totalorder %s17, 1
      %p140 = por %p138, %p139
      %p141 = scmp.ne.s32.totalorder %s130, %s131
      %p142 = scmp.eq.s32.totalorder %s17, 0
      %p143 = por %p141, %p142
      %p144 = scmp.ne.s32.totalorder %s130, %s131
      %p145 = scmp.eq.s32.totalorder %s18, 1
      %p146 = por %p144, %p145
      %p148 = scmp.ne.s32.totalorder %s131, %s147
      %p149 = scmp.eq.s32.totalorder %s18, 0
      %p150 = por %p148, %p149
      %p151 = scmp.le.s32.totalorder 1, %s12
      %p152 = scmp.lt.s32.totalorder %s12, 3
      %p153 = pnand %p151, %p152
      %p154 = pneg %p153
      // Predicated region
      $region9: #{tpu_custom_call.1} parent=5 // pred_check
        _
      $region10: #{tpu_custom_call.1} parent=5 // pred_check_branch
        %156 = sbr.rel (%p153) target = $region12
      $region11: #{tpu_custom_call.1} parent=5 // pred_region
        %s157 = ssub.s32 %s12, 1
        // Predicated region
        $region13: #{tpu_custom_call.1} parent=11 // pred_check
          %p158 = pneg %p87
        $region14: #{tpu_custom_call.1} parent=11 // pred_check_branch
          %160 = sbr.rel (%p158) target = $region16
        $region15: #{tpu_custom_call.1} parent=11 // pred_region
          %p161 = scmp.lt.s32.totalorder %s23, 0
          %s162 = scalar_select %p161, %s23, 0
          %s163 = smul.addr %s162, 4
          %s164 = scalar_lea.vmem %s1, %s163
        $region16: #{tpu_custom_call.1} parent=11 // pred_fallthru
          _
        // Predicated region
        $region17: #{tpu_custom_call.1} parent=11 // pred_check
          %p165 = pneg %p113
        $region18: #{tpu_custom_call.1} parent=11 // pred_check_branch
          %167 = sbr.rel (%p165) target = $region20
        $region19: #{tpu_custom_call.1} parent=11 // pred_region
          %p168 = scmp.lt.s32.totalorder %s23, 0
          %s169 = scalar_select %p168, %s23, 0
          %s170 = smul.addr %s169, 8
          %s171 = scalar_lea.vmem %s2, %s170
        $region20: #{tpu_custom_call.1} parent=11 // pred_fallthru
          _
      $region12: #{tpu_custom_call.1} parent=5 // pred_fallthru
        _
      %p172 = scmp.lt.s32.totalorder %s12, 2
      // Predicated region
      $region21: #{tpu_custom_call.1} parent=5 // pred_check
        %p173 = pneg %p172
      $region22: #{tpu_custom_call.1} parent=5 // pred_check_branch
        %175 = sbr.rel (%p173) target = $region24
      $region23: #{tpu_custom_call.1} parent=5 // pred_region
        // Predicated region
        $region25: #{tpu_custom_call.1} parent=23 // pred_check
          %p176 = pneg %p55
        $region26: #{tpu_custom_call.1} parent=23 // pred_check_branch
          %178 = sbr.rel (%p176) target = $region28
        $region27: #{tpu_custom_call.1} parent=23 // pred_region
          %s179 = smul.u32 2, %s21
          %p180 = scmp.lt.s32.totalorder %s20, 0
          %s181 = scalar_select %p180, %s20, 0
          %p182 = scmp.lt.s32.totalorder %s19, 1
          %s183 = scalar_select %p182, %s19, 1
          %p184 = scmp.lt.s32.totalorder %s179, 1
          %s185 = scalar_select %p184, %s179, 1
          %s186 = smul.addr %s183, 4
          %s187 = sadd.s32 %s185, %s186
          %s188 = smul.addr %s181, 8
          %s189 = sadd.s32 %s187, %s188
          %s190 = smul.addr %s189, 4
          %s191 = scalar_lea.vmem %s0, %s190
          %s192 = smul.u32 2, %s21
        $region28: #{tpu_custom_call.1} parent=23 // pred_fallthru
          _
      $region24: #{tpu_custom_call.1} parent=5 // pred_fallthru
        _
      %p193 = scmp.le.s32.totalorder 1, %s12
      %p194 = scmp.lt.s32.totalorder %s12, 3
      %p195 = pnand %p193, %p194
      %p196 = pneg %p195
      // Predicated region
      $region29: #{tpu_custom_call.1} parent=5 // pred_check
        _
      $region30: #{tpu_custom_call.1} parent=5 // pred_check_branch
        %198 = sbr.rel (%p195) target = $region32
      $region31: #{tpu_custom_call.1} parent=5 // pred_region
        %s199 = ssub.s32 %s12, 1
        %s200 = smul.u32 2, %s24
        %p201 = scmp.lt.s32.totalorder %s23, 0
        %s202 = scalar_select %p201, %s23, 0
        %p203 = scmp.lt.s32.totalorder %s22, 1
        %s204 = scalar_select %p203, %s22, 1
        %p205 = scmp.lt.s32.totalorder %s200, 1
        %s206 = scalar_select %p205, %s200, 1
        %s207 = smul.addr %s204, 4
        %s208 = sadd.s32 %s206, %s207
        %s209 = smul.addr %s202, 8
        %s210 = sadd.s32 %s208, %s209
        %s211 = smul.addr %s210, 4
        %s212 = scalar_lea.vmem %s0, %s211
        %p213 = pneg %p61
        %p214 = pneg %p58
        %p215 = scmp.lt.s32.totalorder %s23, 0
        %s216 = scalar_select %p215, %s23, 0
        %s217 = smul.addr %s216, 4
        %s218 = scalar_lea.vmem %s1, %s217
        %p219 = pneg %p87
        %p220 = pneg %p84
        %p221 = scmp.lt.s32.totalorder %s23, 0
        %s222 = scalar_select %p221, %s23, 0
        %s223 = smul.addr %s222, 8
        %s224 = scalar_lea.vmem %s2, %s223
        %p225 = pneg %p113
        %p226 = pneg %p110
        %p227 = pneg %p143
        %p228 = pneg %p140
        %s229 = sand.u32 %s130, 1
        %s230 = scalar_lea.sflag [#allocation3], %s229
        %s231 = sand.u32 %s130, 1
        %s232 = smul.addr %s231, 16
        %s233 = scalar_lea.vmem [#allocation2], %s232
        %s234 = smul.u32 2, %s24
        %p235 = scmp.lt.s32.totalorder %s23, 0
        %s236 = scalar_select %p235, %s23, 0
        %p237 = scmp.lt.s32.totalorder %s22, 1
        %s238 = scalar_select %p237, %s22, 1
        %p239 = scmp.lt.s32.totalorder %s234, 1
        %s240 = scalar_select %p239, %s234, 1
        %s241 = smul.addr %s238, 4
        %s242 = sadd.s32 %s240, %s241
        %s243 = smul.addr %s236, 8
        %s244 = sadd.s32 %s242, %s243
        %s245 = smul.addr %s244, 4
        %s246 = scalar_lea.vmem %s0, %s245
        %s247 = smul.u32 2, %s24
        %p248 = scmp.lt.s32.totalorder %s23, 0
        %s249 = scalar_select %p248, %s23, 0
        %s250 = smul.addr %s249, 4
        %s251 = scalar_lea.vmem %s1, %s250
        %p252 = scmp.lt.s32.totalorder %s23, 0
        %s253 = scalar_select %p252, %s23, 0
        %s254 = smul.addr %s253, 8
        %s255 = scalar_lea.vmem %s2, %s254
        %s256 = smul.u32 2, %s24
        %v258 = vld [vmem:[%s251] sm:$0xf]
        %v259 = vld [vmem:[%s246] sm:$0xff]
        %v260 = vld [vmem:[%s246 + $0x8] sm:$0x33]
        %v261 = vld [vmem:[%s255] sm:$0xff]
        %263 = vset.pattern.permute.xlu0 0
        %264 = vperm.xlu0 %263, %v261
        %v265 = vpop.permute.xlu0 %264
        %v269 = vunpack.c.l.b16 %v259
        %v270 = vunpack.c.h.b16 %v259
        %v271 = vunpack.c.l.b16 %v260
        %v272 = vunpack.c.h.b16 %v260
        %v273 = vpack.c.b16 %v271, %v269
        %v274 = vpack.c.b16 %v272, %v270
        %vm275 = vcmask 97280
        %v277 = vsel %vm275, %v258, 0
        %vm279 = vcmask 1045504
        %v281 = vsel %vm279, %v273, 0
        %v284 = vsel %vm279, %v274, 0
        %286 = vmatprep.subr.bf16.mxu0 %v284
        %287 = vmatpush1.bf16.msra.mxu0 %v281
        %288 = vmatprep.subr.bf16.mxu0 0
        %289 = vmatpush1.bf16.msra.mxu0 0
        %290 = vmatprep.subr.bf16.mxu0 0
        %291 = vmatpush1.bf16.msra.mxu0 0
        %292 = vmatprep.subr.bf16.mxu0 0
        %293 = vmatpush1.bf16.msra.mxu0 0
        %294 = vmatprep.subr.bf16.mxu0 0
        %295 = vmatpush1.bf16.msra.mxu0 0
        %296 = vmatprep.subr.bf16.mxu0 0
        %297 = vmatpush1.bf16.msra.mxu0 0
        %298 = vmatprep.subr.bf16.mxu0 0
        %299 = vmatpush1.bf16.msra.mxu0 0
        %300 = vmatprep.subr.bf16.mxu0 0
        %301 = vmatpush1.bf16.msra.mxu0 0
        %302 = vmatprep.subr.bf16.mxu0 0
        %303 = vmatpush1.bf16.msra.mxu0 0
        %304 = vmatprep.subr.bf16.mxu0 0
        %305 = vmatpush1.bf16.msra.mxu0 0
        %306 = vmatprep.subr.bf16.mxu0 0
        %307 = vmatpush1.bf16.msra.mxu0 0
        %308 = vmatprep.subr.bf16.mxu0 0
        %309 = vmatpush1.bf16.msra.mxu0 0
        %310 = vmatprep.subr.bf16.mxu0 0
        %311 = vmatpush1.bf16.msra.mxu0 0
        %312 = vmatprep.subr.bf16.mxu0 0
        %313 = vmatpush1.bf16.msra.mxu0 0
        %314 = vmatprep.subr.bf16.mxu0 0
        %315 = vmatpush1.bf16.msra.mxu0 0
        %316 = vmatprep.subr.bf16.mxu0 0
        %317 = vmatpush1.bf16.msra.mxu0 0
        %318 = vmatprep.mubr.bf16.mxu0 0
        %319 = vmatmul.mubr.bf16.gmra.mrb[0].mxu0 %v277
        %v320 = vpop.f32.mrb[0].mxu0
        %v321 = vadd.f32 %v265, %v320
        %v322 = vpop.f32.mrb[0].mxu0
        %v323 = vadd.f32 %v265, %v322
        %v324 = vpop.f32.mrb[0].mxu0
        %v325 = vpop.f32.mrb[0].mxu0
        %326 = vdwg.mxu0
        %327 = vst [vmem:[%s233] sm:$0xff] %v321
        %328 = vst [vmem:[%s233 + $0x8] sm:$0xff] %v323
        %s329 = sand.u32 %s130, 1
        %s330 = scalar_lea.sflag [#allocation3], %s329
        %s331 = sand.u32 %s130, 1
        %s332 = smul.addr %s331, 16
        %s333 = scalar_lea.vmem [#allocation2], %s332
        // Predicated region
        $region33: #{tpu_custom_call.1} parent=31 // pred_check
          %p334 = pneg %p140
        $region34: #{tpu_custom_call.1} parent=31 // pred_check_branch
          %336 = sbr.rel (%p334) target = $region36
        $region35: #{tpu_custom_call.1} parent=31 // pred_region
          %s337 = smul.u32 2, %s24
          %s339 = ssub.s32 256, 256
          %340 = vsyncadd %s330, %s339
          %s341 = smul.addr %s23, 2
          %s342 = sadd.s32 %s337, %s341
          %s343 = smul.addr %s22, 2
          %s344 = sadd.s32 %s342, %s343
          %s345 = smul.addr %s344, 128
          %s346 = scalar_lea.hbm %s3, %s345
          %s348 = sshll.u32 %s333, 4
          %s349 = int_to_ptr.vmem [resolvable:$true] %s348
          %351 = dma.vmem_to_hbm [thread:$0]  %s349, 256, %s346, %s330
        $region36: #{tpu_custom_call.1} parent=31 // pred_fallthru
          _
      $region32: #{tpu_custom_call.1} parent=5 // pred_fallthru
        _
      %p352 = scmp.le.s32.totalorder 2, %s12
      // Predicated region
      $region37: #{tpu_custom_call.1} parent=5 // pred_check
        %p353 = pneg %p352
      $region38: #{tpu_custom_call.1} parent=5 // pred_check_branch
        %355 = sbr.rel (%p353) target = $region40
      $region39: #{tpu_custom_call.1} parent=5 // pred_region
        %s356 = ssub.s32 %s12, 2
        // Predicated region
        $region41: #{tpu_custom_call.1} parent=39 // pred_check
          %p357 = pneg %p146
        $region42: #{tpu_custom_call.1} parent=39 // pred_check_branch
          %359 = sbr.rel (%p357) target = $region44
        $region43: #{tpu_custom_call.1} parent=39 // pred_region
          %s360 = sand.u32 %s131, 1
          %s361 = scalar_lea.sflag [#allocation3], %s360
          %s362 = sand.u32 %s131, 1
          %s363 = smul.addr %s362, 16
          %s364 = scalar_lea.vmem [#allocation2], %s363
          %365 = dma.done %s361, 256
        $region44: #{tpu_custom_call.1} parent=39 // pred_fallthru
          _
      $region40: #{tpu_custom_call.1} parent=5 // pred_fallthru
        _
    $region6: #{tpu_custom_call.1} parent=1 // loop_footer
      %s16 = sadd.s32 1, %s12
    $region7: #{tpu_custom_call.1} parent=1 // loop_footer_branch
      %11 = sbr.rel target = $region3
    $region8: #{tpu_custom_call.1} parent=1 // loop_exit
      _
    %366 = vsyncpa [#allocation3], 1
    %s367 = scalar_lea.sflag [#allocation3], 1
    %368 = vsyncpa %s367, 1

</llo_original>
